<compile_context>
chip_gen: v7x
topology: tpu7x:2x2x1
jax: 0.10.0
libtpu: 0.0.40
codegen_flags: <defaults>
</compile_context>

<pallas_src>
import functools

import jax
import jax.numpy as jnp
from jax.experimental import pallas as pl
from jax.experimental.pallas import tpu as pltpu


def _round_up(x, m):
    return (x + m - 1) // m * m


def _tpu_caps():
    """(per-core VMEM capacity bytes, TensorCores per chip) with safe fallbacks."""
    vmem_cap = 128 * 1024 * 1024
    n_cores = 1
    try:
        info = pltpu.get_tpu_info()
        vmem_cap = int(getattr(info, "vmem_capacity_bytes", vmem_cap))
        for attr in ("num_tensorcores", "tensorcores_per_chip", "num_cores",
                     "cores_per_chip"):
            v = getattr(info, attr, None)
            if v:
                n_cores = int(v)
                break
    except Exception:
        pass
    # Heuristic: 64 MiB/TC chips (v7x-class) have 2 TensorCores per chip.
    if n_cores == 1 and vmem_cap <= 64 * 1024 * 1024:
        n_cores = 2
    return vmem_cap, n_cores


def _chip_is_v5e():
    """v5e has no bf16 VALU -> keep the f32 FMA path there."""
    try:
        kind = jax.devices()[0].device_kind.lower()
        return ("v5e" in kind) or ("v5 lite" in kind) or ("v5lite" in kind)
    except Exception:
        return False


def _film_kernel(x_ref, c_ref, w_ref, b_ref, o_ref, *, acc_dtype):
    # x_ref: (1, Co,      t_hw)  observation tile (channels on sublanes)
    # c_ref: (1, Cc,      t_hw)  conditioning tile
    # w_ref: (2*Co_pad,   Cc)    fused, row-padded [Wf; Wh] 1x1-conv weights (f32)
    # b_ref: (2*Co_pad,   1)     fused, row-padded [bf; bh] biases (f32)
    # o_ref: (1, Co,      t_hw)
    co = o_ref.shape[1]
    co_pad = w_ref.shape[0] // 2
    # One fused MXU matmul yields gamma and beta together: (2*Co_pad, t_hw), f32.
    gb = jnp.dot(w_ref[...], c_ref[0].astype(jnp.float32),
                 preferred_element_type=jnp.float32) + b_ref[...]
    gamma = gb[:co, :].astype(acc_dtype)                 # starts at sublane 0
    beta = gb[co_pad:co_pad + co, :].astype(acc_dtype)   # Co_pad % 8 == 0 split
    o_ref[0] = (gamma * x_ref[0].astype(acc_dtype) + beta).astype(o_ref.dtype)


def _pick_spatial_tile(hw, co, co_pad, cc, io_itemsize, acc_itemsize,
                       vmem_budget_bytes, min_blocks=1):
    """Largest lane-dense spatial tile (multiple of 128, or full extent) such
    that the double-buffered streams (x, conds, out) PLUS the in-kernel
    temporaries (f32 gb matmul result, x upcast) fit in the per-step VMEM
    budget. Tiles are even-split so the tail block is never tiny/padded."""
    per_lane = (2 * (2 * co + cc) * io_itemsize   # x + conds + out, double-buffered
                + 2 * co_pad * 4                  # gb matmul result (f32)
                + co * acc_itemsize)              # upcast / FMA temporary
    cap = max(128, (vmem_budget_bytes // per_lane) // 128 * 128)
    n_blocks = max(pl.cdiv(hw, cap), min_blocks, 1)
    if n_blocks <= 1:
        return hw                                 # full spatial extent, one block
    t_hw = _round_up(pl.cdiv(hw, n_blocks), 128)  # balanced, lane-dense blocks
    return min(t_hw, hw)


@functools.partial(jax.jit, static_argnames=("t_hw",))
def film_forward(x, conds, wf, bf, wh, bh, *, t_hw=None):
    """FiLM forward, reduction='none'.

    x:     (B, Co, H, W)  NCHW observation features
    conds: (B, Cc, H, W)  NCHW conditioning features
    wf,wh: (Co, Cc)       1x1 conv weights (PyTorch (out, in, 1, 1) squeezed)
    bf,bh: (Co,)          biases
    """
    B, Co, H, W = x.shape
    Cc = conds.shape[1]
    HW = H * W

    # ---- generation-aware VMEM sizing --------------------------------------
    vmem_cap, n_cores = _tpu_caps()
    # ~48 MiB on v7x (64 MiB/TC physical), 64 MiB on v5e/v6e (128 MiB physical),
    # leaving headroom for Mosaic internal scratch.
    vmem_limit = int(min(64 * 1024 * 1024, (vmem_cap * 3) // 4))
    stream_budget = max(4 * 1024 * 1024, vmem_limit // 2 - 4 * 1024 * 1024)

    # Sublane-align the gamma/beta split point by row-padding the fused weights.
    Co_pad = _round_up(Co, 8)

    # bf16 FMA on chips with a bf16 VPU (v6e/v7x); f32 elsewhere / for f32 I/O.
    if x.dtype == jnp.bfloat16 and not _chip_is_v5e():
        acc_dtype = jnp.bfloat16
    else:
        acc_dtype = jnp.float32

    # Guarantee >= n_cores "parallel" grid steps for multi-TC chips (v7x) when
    # the batch axis alone cannot feed every TensorCore.
    min_blocks = n_cores if (n_cores > 1 and B % n_cores != 0) else 1

    if t_hw is None:
        t_hw = _pick_spatial_tile(
            HW, Co, Co_pad, Cc,
            io_itemsize=x.dtype.itemsize,
            acc_itemsize=jnp.dtype(acc_dtype).itemsize,
            vmem_budget_bytes=stream_budget,
            min_blocks=min_blocks)

    # NCHW viewed as (B, C, H*W): free reshape, no extra HBM traffic.
    x3 = x.reshape(B, Co, HW)
    c3 = conds.reshape(B, Cc, HW)

    # Fuse the two 1x1 convs: one weight (2*Co_pad, Cc), one bias (2*Co_pad, 1).
    def _pad_rows(a):
        if Co_pad == Co:
            return a
        return jnp.pad(a, ((0, Co_pad - Co),) + ((0, 0),) * (a.ndim - 1))

    w = jnp.concatenate([_pad_rows(wf), _pad_rows(wh)], axis=0).astype(jnp.float32)
    b = jnp.concatenate([_pad_rows(bf), _pad_rows(bh)],
                        axis=0).reshape(2 * Co_pad, 1).astype(jnp.float32)

    grid = (B, pl.cdiv(HW, t_hw))

    itemsize = x.dtype.itemsize
    cost = pl.CostEstimate(
        flops=2 * B * (2 * Co_pad) * Cc * HW + 2 * B * Co * HW,
        transcendentals=0,
        bytes_accessed=(2 * Co + Cc) * B * HW * itemsize
                       + 2 * Co_pad * (Cc + 1) * 4,
    )

    kernel = functools.partial(_film_kernel, acc_dtype=acc_dtype)

    out3 = pl.pallas_call(
        kernel,
        out_shape=jax.ShapeDtypeStruct((B, Co, HW), x.dtype),
        grid_spec=pltpu.PrefetchScalarGridSpec(
            num_scalar_prefetch=0,
            grid=grid,
            in_specs=[
                pl.BlockSpec((1, Co, t_hw), lambda bi, j: (bi, 0, j)),     # x
                pl.BlockSpec((1, Cc, t_hw), lambda bi, j: (bi, 0, j)),     # conds
                pl.BlockSpec((2 * Co_pad, Cc), lambda bi, j: (0, 0)),      # [Wf;Wh]
                pl.BlockSpec((2 * Co_pad, 1), lambda bi, j: (0, 0)),       # [bf;bh]
            ],
            out_specs=pl.BlockSpec((1, Co, t_hw), lambda bi, j: (bi, 0, j)),
        ),
        compiler_params=pltpu.CompilerParams(
            dimension_semantics=("parallel", "parallel"),
            vmem_limit_bytes=vmem_limit,
        ),
        cost_estimate=cost,
    )(x3, c3, w, b)

    # (B, Co, HW) -> NCHW: free reshape.
    return out3.reshape(B, Co, H, W)


def film_reference(x, conds, wf, bf, wh, bh):
    # Pure-JAX reference of the PyTorch semantics (1x1 conv on NCHW).
    gamma = jnp.einsum("oc,bchw->bohw", wf, conds) + bf[None, :, None, None]
    beta = jnp.einsum("oc,bchw->bohw", wh, conds) + bh[None, :, None, None]
    return gamma * x + beta


if __name__ == "__main__":
    key = jax.random.PRNGKey(0)

    def make_case(k, B, C, H, W):
        kx, kc, kwf, kbf, kwh, kbh = jax.random.split(k, 6)
        x = jax.random.normal(kx, (B, C, H, W), jnp.float32)
        conds = jax.random.normal(kc, (B, C, H, W), jnp.float32)
        # Deterministic synthetic Conv2d(C, C, 1) parameter init.
        scale = 1.0 / jnp.sqrt(jnp.float32(C))
        wf = jax.random.uniform(kwf, (C, C), jnp.float32, -scale, scale)
        bf = jax.random.uniform(kbf, (C,), jnp.float32, -scale, scale)
        wh = jax.random.uniform(kwh, (C, C), jnp.float32, -scale, scale)
        bh = jax.random.uniform(kbh, (C,), jnp.float32, -scale, scale)
        return x, conds, wf, bf, wh, bh

    k1, k2 = jax.random.split(key)

    # Case 1: FiLM stage with Co = Cc = 8 (sublane-aligned), 32x32 spatial.
    args1 = make_case(k1, 2, 8, 32, 32)
    out1 = jax.block_until_ready(film_forward(*args1))
    ref1 = film_reference(*args1)
    assert out1.shape == args1[0].shape and out1.dtype == args1[0].dtype
    assert jnp.allclose(out1, ref1, atol=1e-5, rtol=1e-5)

    # Case 2: non-multiple-of-8 channel count exercises the Co -> Co_pad row
    # padding of the fused weights (gamma/beta split stays sublane-aligned).
    args2 = make_case(k2, 2, 12, 16, 16)
    out2 = jax.block_until_ready(film_forward(*args2))
    ref2 = film_reference(*args2)
    assert out2.shape == args2[0].shape and out2.dtype == args2[0].dtype
    assert jnp.allclose(out2, ref2, atol=1e-5, rtol=1e-5)

    print("KERNEL_OK")
</pallas_src>

<mosaic_0001>
module attributes {stable_mosaic.version = 11 : i64} {
  func.func @_film_kernel(%arg0: i32, %arg1: i32, %arg2: memref<1x8x1024xf32, #tpu.memory_space<vmem>>, %arg3: memref<1x8x1024xf32, #tpu.memory_space<vmem>>, %arg4: memref<16x8xf32, #tpu.memory_space<vmem>>, %arg5: memref<16x1xf32, #tpu.memory_space<vmem>>, %arg6: memref<1x8x1024xf32, #tpu.memory_space<vmem>>) attributes {dimension_semantics = [#tpu.dimension_semantics<parallel>, #tpu.dimension_semantics<parallel>], iteration_bounds = array<i64: 2, 1>, scalar_prefetch = 0 : i64, scratch_operands = 0 : i64, tpu.core_type = #tpu.core_type<tc>, window_params = [{transform_indices = @transform_0, window_bounds = array<i64: 1, 8, 1024>}, {transform_indices = @transform_1, window_bounds = array<i64: 1, 8, 1024>}, {pipeline_mode = #tpu.pipeline_mode<synchronous>, transform_indices = @transform_2, window_bounds = array<i64: 16, 8>}, {pipeline_mode = #tpu.pipeline_mode<synchronous>, transform_indices = @transform_3, window_bounds = array<i64: 16, 1>}, {transform_indices = @transform_4, window_bounds = array<i64: 1, 8, 1024>}]} {
    %c0 = arith.constant 0 : index
    %c0_0 = arith.constant 0 : index
    %0 = vector.load %arg4[%c0, %c0_0] : memref<16x8xf32, #tpu.memory_space<vmem>>, vector<16x8xf32>
    %c0_1 = arith.constant 0 : index
    %c0_2 = arith.constant 0 : index
    %c0_3 = arith.constant 0 : index
    %1 = vector.load %arg3[%c0_1, %c0_2, %c0_3] : memref<1x8x1024xf32, #tpu.memory_space<vmem>>, vector<1x8x1024xf32>
    %2 = vector.shape_cast %1 : vector<1x8x1024xf32> to vector<8x1024xf32>
    %cst = arith.constant dense<0.000000e+00> : vector<16x1024xf32>
    %3 = tpu.matmul %0, %2, %cst {dimension_numbers = #tpu.dot_dimension_numbers<[1], [0], [0], [1], [0, 0, 1, 1], [], []>} : vector<16x8xf32>, vector<8x1024xf32>, vector<16x1024xf32> -> vector<16x1024xf32>
    %c0_4 = arith.constant 0 : index
    %c0_5 = arith.constant 0 : index
    %4 = vector.load %arg5[%c0_4, %c0_5] : memref<16x1xf32, #tpu.memory_space<vmem>>, vector<16x1xf32>
    %5 = vector.broadcast %4 : vector<16x1xf32> to vector<16x1024xf32>
    %6 = arith.addf %3, %5 : vector<16x1024xf32>
    %7 = vector.extract_strided_slice %6 {offsets = [0, 0], sizes = [8, 1024], strides = [1, 1]} : vector<16x1024xf32> to vector<8x1024xf32>
    %8 = vector.extract_strided_slice %6 {offsets = [8, 0], sizes = [8, 1024], strides = [1, 1]} : vector<16x1024xf32> to vector<8x1024xf32>
    %c0_6 = arith.constant 0 : index
    %c0_7 = arith.constant 0 : index
    %c0_8 = arith.constant 0 : index
    %9 = vector.load %arg2[%c0_6, %c0_7, %c0_8] : memref<1x8x1024xf32, #tpu.memory_space<vmem>>, vector<1x8x1024xf32>
    %10 = vector.shape_cast %9 : vector<1x8x1024xf32> to vector<8x1024xf32>
    %11 = arith.mulf %7, %10 : vector<8x1024xf32>
    %12 = arith.addf %11, %8 : vector<8x1024xf32>
    %c0_9 = arith.constant 0 : index
    %c0_10 = arith.constant 0 : index
    %c0_11 = arith.constant 0 : index
    %13 = vector.load %arg6[%c0_9, %c0_10, %c0_11] : memref<1x8x1024xf32, #tpu.memory_space<vmem>>, vector<1x8x1024xf32>
    %14 = vector.shape_cast %13 : vector<1x8x1024xf32> to vector<8x1024xf32>
    %15 = vector.shape_cast %12 : vector<8x1024xf32> to vector<1x8x1024xf32>
    tpu.vector_store %arg6[%c0_9, %c0_10, %c0_11], %15 {strides = array<i32>} : memref<1x8x1024xf32, #tpu.memory_space<vmem>>, vector<1x8x1024xf32>,
    return
  }
  func.func @transform_0(%arg0: i32, %arg1: i32) -> (i32, i32, i32) {
    %c0_i32 = arith.constant 0 : i32
    %c0_i32_0 = arith.constant 0 : i32
    return %arg0, %c0_i32, %arg1 : i32, i32, i32
  }
  func.func @transform_1(%arg0: i32, %arg1: i32) -> (i32, i32, i32) {
    %c0_i32 = arith.constant 0 : i32
    %c0_i32_0 = arith.constant 0 : i32
    return %arg0, %c0_i32, %arg1 : i32, i32, i32
  }
  func.func @transform_2(%arg0: i32, %arg1: i32) -> (i32, i32) {
    %c0_i32 = arith.constant 0 : i32
    %c0_i32_0 = arith.constant 0 : i32
    %c0_i32_1 = arith.constant 0 : i32
    return %c0_i32, %c0_i32_0 : i32, i32
  }
  func.func @transform_3(%arg0: i32, %arg1: i32) -> (i32, i32) {
    %c0_i32 = arith.constant 0 : i32
    %c0_i32_0 = arith.constant 0 : i32
    %c0_i32_1 = arith.constant 0 : i32
    return %c0_i32, %c0_i32_0 : i32, i32
  }
  func.func @transform_4(%arg0: i32, %arg1: i32) -> (i32, i32, i32) {
    %c0_i32 = arith.constant 0 : i32
    %c0_i32_0 = arith.constant 0 : i32
    return %arg0, %c0_i32, %arg1 : i32, i32, i32
  }
}

</mosaic_0001>

<llo_original>
// kernel: film_forward.1
$region0: #{film_forward.1}
  #allocation0 [shape = 'u32[]', space=smem, size = 0x4, offset = 0x4, fixed_abs, tag = 'smem constant byte address 0x4 - core index']
  #allocation1 [shape = 'u32[144,128]{1,0:T(1,128)}', space=vmem, size = 0x12000, scoped, tag = 'internal scratch']
  %s0 = inlined_call_operand.hbm [shape: f32[2,8,1024], index: 0, kind: input, shape index: {}]
  %s1 = inlined_call_operand.hbm [shape: f32[2,8,1024], index: 1, kind: input, shape index: {}]
  %s2 = inlined_call_operand.hbm [shape: f32[16,8], index: 2, kind: input, shape index: {}]
  %s3 = inlined_call_operand.hbm [shape: f32[16,1], index: 3, kind: input, shape index: {}]
  %s4 = inlined_call_operand.hbm [shape: f32[2,8,1024], index: 4, kind: output, shape index: {}]
  %s5 = sld [smem:[#allocation0]]
  $region65: #{film_forward.1} parent=0
    _
  %s7 = ssub.s32 1, %s5
  %s8 = scalar_select 0, %s7, %s5
  $region1: #{film_forward.1} parent=0
    #allocation2 [shape = 'u8[65536]{0}', space=vmem, size = 0x10000, scoped, tag = 'input window, operand 0']
    #allocation3 [shape = 's32[2]{0}', space=sflag, size = 0x8, scoped, tag = 'scoped memory for film_forward.1']
    #allocation4 [shape = 's32[2]{0}', space=sflag, size = 0x8, scoped, tag = 'scoped memory for film_forward.1']
    #allocation5 [shape = 'u8[65536]{0}', space=vmem, size = 0x10000, scoped, tag = 'input window, operand 1']
    #allocation6 [shape = 's32[2]{0}', space=sflag, size = 0x8, scoped, tag = 'scoped memory for film_forward.1']
    #allocation7 [shape = 'u8[8192]{0}', space=vmem, size = 0x2000, scoped, tag = 'input window, operand 2, single buffered']
    #allocation8 [shape = 'u8[8192]{0}', space=vmem, size = 0x2000, scoped, tag = 'input window, operand 3, single buffered']
    #allocation9 [shape = 's32[1]{0}', space=sflag, size = 0x4, scoped, tag = 'scoped memory for film_forward.1']
    #allocation10 [shape = 'u8[65536]{0}', space=vmem, size = 0x10000, scoped, tag = 'output window, operand 0']
    %9 = vsyncpa [#allocation3], 0
    %s10 = scalar_lea.sflag [#allocation3], 1
    %11 = vsyncpa %s10, 0
    %12 = vsyncpa [#allocation6], 0
    %s13 = scalar_lea.sflag [#allocation6], 1
    %14 = vsyncpa %s13, 0
    %15 = vsyncpa [#allocation9], 0
    %16 = vsyncpa [#allocation4], 0
    %s17 = scalar_lea.sflag [#allocation4], 1
    %18 = vsyncpa %s17, 0
    loop: start=0, step=1, limit=4
    $region2: #{film_forward.1} parent=1 // loop_pre_header
      _
    $region3: #{film_forward.1} parent=1 // loop_header
      %s20 = sphi 0, %s24
      %p21 = scmp.ge.s32.totalorder %s20, 4
      %s27 = sphi 0, %s39
      %s28 = sphi 0, %s35
      %s29 = sphi 0, %s27
      %s30 = sphi 0, %s28
      %s31 = sphi 0, %s29
      %s32 = sphi 0, %s30
      %s44 = sphi 0, %s46
      %s47 = sphi 0, %s44
      %s48 = sphi 0, %s47
      %s64 = sphi 0, %s48
      %s72 = sphi 0, %s74
      %s75 = sphi 0, %s72
      %s76 = sphi 0, %s75
      %s92 = sphi 0, %s76
      %s96 = sphi 0, %s96
      %s98 = sphi 0, %s96
      %s99 = sphi 0, %s98
      %s113 = sphi 0, %s99
      %s117 = sphi 0, %s117
      %s119 = sphi 0, %s117
      %s120 = sphi 0, %s119
      %s134 = sphi 0, %s120
      %s142 = sphi 0, %s144
      %s145 = sphi 0, %s142
      %s146 = sphi 0, %s145
      %s162 = sphi 0, %s146
    $region4: #{film_forward.1} parent=1 // loop_header_branch
      %23 = sbr.rel (%p21) target = $region8
    $region5: #{film_forward.1} parent=1 // loop_body
      %s25 = ssub.s32 %s20, 1
      %s26 = ssub.s32 %s20, 2
      %s33 = sadd.s32 1, %s28
      %p34 = scmp.ge.s32.totalorder %s33, 1
      %s35 = scalar_select %p34, 0, %s33
      %s36 = sadd.s32 1, %s27
      %s37 = scalar_select %p34, %s36, %s27
      %p38 = scmp.ge.s32.totalorder %s37, 2
      %s39 = scalar_select %p38, 0, %s37
      %s40 = ssub.s32 %s27, %s39
      %s41 = ssub.s32 %s28, %s35
      %s42 = sor.u32 %s40, %s41
      %p43 = scmp.eq.s32.totalorder %s42, 0
      %s45 = sadd.s32 %s44, 1
      %s46 = scalar_select %p43, %s44, %s45
      %p49 = pneg %p43
      %p50 = scmp.eq.s32.totalorder %s20, 1
      %p51 = por %p49, %p50
      %p52 = scmp.ne.s32.totalorder %s44, %s47
      %p53 = scmp.eq.s32.totalorder %s20, 0
      %p54 = por %p52, %p53
      %p55 = scmp.ne.s32.totalorder %s44, %s47
      %p56 = scmp.eq.s32.totalorder %s25, 1
      %p57 = por %p55, %p56
      %p58 = scmp.ne.s32.totalorder %s47, %s48
      %p59 = scmp.eq.s32.totalorder %s25, 0
      %p60 = por %p58, %p59
      %p61 = scmp.ne.s32.totalorder %s47, %s48
      %p62 = scmp.eq.s32.totalorder %s26, 1
      %p63 = por %p61, %p62
      %p65 = scmp.ne.s32.totalorder %s48, %s64
      %p66 = scmp.eq.s32.totalorder %s26, 0
      %p67 = por %p65, %p66
      %s68 = ssub.s32 %s27, %s39
      %s69 = ssub.s32 %s28, %s35
      %s70 = sor.u32 %s68, %s69
      %p71 = scmp.eq.s32.totalorder %s70, 0
      %s73 = sadd.s32 %s72, 1
      %s74 = scalar_select %p71, %s72, %s73
      %p77 = pneg %p71
      %p78 = scmp.eq.s32.totalorder %s20, 1
      %p79 = por %p77, %p78
      %p80 = scmp.ne.s32.totalorder %s72, %s75
      %p81 = scmp.eq.s32.totalorder %s20, 0
      %p82 = por %p80, %p81
      %p83 = scmp.ne.s32.totalorder %s72, %s75
      %p84 = scmp.eq.s32.totalorder %s25, 1
      %p85 = por %p83, %p84
      %p86 = scmp.ne.s32.totalorder %s75, %s76
      %p87 = scmp.eq.s32.totalorder %s25, 0
      %p88 = por %p86, %p87
      %p89 = scmp.ne.s32.totalorder %s75, %s76
      %p90 = scmp.eq.s32.totalorder %s26, 1
      %p91 = por %p89, %p90
      %p93 = scmp.ne.s32.totalorder %s76, %s92
      %p94 = scmp.eq.s32.totalorder %s26, 0
      %p95 = por %p93, %p94
      %s97 = sadd.s32 %s96, 1
      %p100 = scmp.eq.s32.totalorder %s20, 1
      %p101 = scmp.ne.s32.totalorder %s96, %s98
      %p102 = scmp.eq.s32.totalorder %s20, 0
      %p103 = por %p101, %p102
      %p104 = scmp.ne.s32.totalorder %s96, %s98
      %p105 = scmp.eq.s32.totalorder %s25, 1
      %p106 = por %p104, %p105
      %p107 = scmp.ne.s32.totalorder %s98, %s99
      %p108 = scmp.eq.s32.totalorder %s25, 0
      %p109 = por %p107, %p108
      %p110 = scmp.ne.s32.totalorder %s98, %s99
      %p111 = scmp.eq.s32.totalorder %s26, 1
      %p112 = por %p110, %p111
      %p114 = scmp.ne.s32.totalorder %s99, %s113
      %p115 = scmp.eq.s32.totalorder %s26, 0
      %p116 = por %p114, %p115
      %s118 = sadd.s32 %s117, 1
      %p121 = scmp.eq.s32.totalorder %s20, 1
      %p122 = scmp.ne.s32.totalorder %s117, %s119
      %p123 = scmp.eq.s32.totalorder %s20, 0
      %p124 = por %p122, %p123
      %p125 = scmp.ne.s32.totalorder %s117, %s119
      %p126 = scmp.eq.s32.totalorder %s25, 1
      %p127 = por %p125, %p126
      %p128 = scmp.ne.s32.totalorder %s119, %s120
      %p129 = scmp.eq.s32.totalorder %s25, 0
      %p130 = por %p128, %p129
      %p131 = scmp.ne.s32.totalorder %s119, %s120
      %p132 = scmp.eq.s32.totalorder %s26, 1
      %p133 = por %p131, %p132
      %p135 = scmp.ne.s32.totalorder %s120, %s134
      %p136 = scmp.eq.s32.totalorder %s26, 0
      %p137 = por %p135, %p136
      %s138 = ssub.s32 %s27, %s39
      %s139 = ssub.s32 %s28, %s35
      %s140 = sor.u32 %s138, %s139
      %p141 = scmp.eq.s32.totalorder %s140, 0
      %s143 = sadd.s32 %s142, 1
      %s144 = scalar_select %p141, %s142, %s143
      %p147 = pneg %p141
      %p148 = scmp.eq.s32.totalorder %s20, 1
      %p149 = por %p147, %p148
      %p150 = scmp.ne.s32.totalorder %s142, %s145
      %p151 = scmp.eq.s32.totalorder %s20, 0
      %p152 = por %p150, %p151
      %p153 = scmp.ne.s32.totalorder %s142, %s145
      %p154 = scmp.eq.s32.totalorder %s25, 1
      %p155 = por %p153, %p154
      %p156 = scmp.ne.s32.totalorder %s145, %s146
      %p157 = scmp.eq.s32.totalorder %s25, 0
      %p158 = por %p156, %p157
      %p159 = scmp.ne.s32.totalorder %s145, %s146
      %p160 = scmp.eq.s32.totalorder %s26, 1
      %p161 = por %p159, %p160
      %p163 = scmp.ne.s32.totalorder %s146, %s162
      %p164 = scmp.eq.s32.totalorder %s26, 0
      %p165 = por %p163, %p164
      %p166 = scmp.le.s32.totalorder 1, %s20
      %p167 = scmp.lt.s32.totalorder %s20, 3
      %p168 = pnand %p166, %p167
      %p169 = pneg %p168
      // Predicated region
      $region9: #{film_forward.1} parent=5 // pred_check
        _
      $region10: #{film_forward.1} parent=5 // pred_check_branch
        %171 = sbr.rel (%p168) target = $region12
      $region11: #{film_forward.1} parent=5 // pred_region
        %s172 = ssub.s32 %s20, 1
        // Predicated region
        $region13: #{film_forward.1} parent=11 // pred_check
          %p173 = pneg %p109
        $region14: #{film_forward.1} parent=11 // pred_check_branch
          %175 = sbr.rel (%p173) target = $region16
        $region15: #{film_forward.1} parent=11 // pred_region
          %s177 = ssub.s32 256, 256
          %178 = vsyncadd [#allocation6], %s177
          %s179 = sshll.u32 [#allocation7], 4
          %s180 = int_to_ptr.vmem [resolvable:$true] %s179
          %185 = dma.hbm_to_vmem [thread:$0]  %s2, 256, %s180, [#allocation6], 128, 128, 8
        $region16: #{film_forward.1} parent=11 // pred_fallthru
          _
        // Predicated region
        $region17: #{film_forward.1} parent=11 // pred_check
          %p186 = pneg %p130
        $region18: #{film_forward.1} parent=11 // pred_check_branch
          %188 = sbr.rel (%p186) target = $region20
        $region19: #{film_forward.1} parent=11 // pred_region
          %s190 = ssub.s32 256, 256
          %191 = vsyncadd [#allocation9], %s190
          %s192 = sshll.u32 [#allocation8], 4
          %s193 = int_to_ptr.vmem [resolvable:$true] %s192
          %198 = dma.hbm_to_vmem [thread:$0]  %s3, 256, %s193, [#allocation9], 128, 128, 8
        $region20: #{film_forward.1} parent=11 // pred_fallthru
          _
      $region12: #{film_forward.1} parent=5 // pred_fallthru
        _
      %p199 = scmp.lt.s32.totalorder %s20, 2
      // Predicated region
      $region21: #{film_forward.1} parent=5 // pred_check
        %p200 = pneg %p199
      $region22: #{film_forward.1} parent=5 // pred_check_branch
        %202 = sbr.rel (%p200) target = $region24
      $region23: #{film_forward.1} parent=5 // pred_region
        // Predicated region
        $region25: #{film_forward.1} parent=23 // pred_check
          %p203 = pneg %p54
        $region26: #{film_forward.1} parent=23 // pred_check_branch
          %205 = sbr.rel (%p203) target = $region28
        $region27: #{film_forward.1} parent=23 // pred_region
          %s206 = sand.u32 %s44, 1
          %s207 = scalar_lea.sflag [#allocation3], %s206
          %s208 = sand.u32 %s44, 1
          %s209 = smul.addr %s208, 64
          %s210 = scalar_lea.vmem [#allocation2], %s209
          %s211 = smul.u32 8, %s28
          %s213 = ssub.s32 1024, 1024
          %214 = vsyncadd %s207, %s213
          %s215 = smul.addr %s27, 8
          %s216 = sadd.s32 %s211, %s215
          %s217 = smul.addr %s216, 128
          %s218 = scalar_lea.hbm %s0, %s217
          %s220 = sshll.u32 %s210, 4
          %s221 = int_to_ptr.vmem [resolvable:$true] %s220
          %223 = dma.hbm_to_vmem [thread:$0]  %s218, 1024, %s221, %s207
        $region28: #{film_forward.1} parent=23 // pred_fallthru
          _
        // Predicated region
        $region29: #{film_forward.1} parent=23 // pred_check
          %p224 = pneg %p82
        $region30: #{film_forward.1} parent=23 // pred_check_branch
          %226 = sbr.rel (%p224) target = $region32
        $region31: #{film_forward.1} parent=23 // pred_region
          %s227 = sand.u32 %s20, 1
          %s228 = scalar_lea.sflag [#allocation6], %s227
          %s229 = sand.u32 %s72, 1
          %s230 = smul.addr %s229, 64
          %s231 = scalar_lea.vmem [#allocation5], %s230
          %s232 = smul.u32 8, %s28
          %s234 = ssub.s32 1024, 1024
          %235 = vsyncadd %s228, %s234
          %s236 = smul.addr %s27, 8
          %s237 = sadd.s32 %s232, %s236
          %s238 = smul.addr %s237, 128
          %s239 = scalar_lea.hbm %s1, %s238
          %s241 = sshll.u32 %s231, 4
          %s242 = int_to_ptr.vmem [resolvable:$true] %s241
          %244 = dma.hbm_to_vmem [thread:$0]  %s239, 1024, %s242, %s228
        $region32: #{film_forward.1} parent=23 // pred_fallthru
          _
      $region24: #{film_forward.1} parent=5 // pred_fallthru
        _
      %p245 = scmp.le.s32.totalorder 1, %s20
      %p246 = scmp.lt.s32.totalorder %s20, 3
      %p247 = pnand %p245, %p246
      %p248 = pneg %p247
      // Predicated region
      $region33: #{film_forward.1} parent=5 // pred_check
        _
      $region34: #{film_forward.1} parent=5 // pred_check_branch
        %250 = sbr.rel (%p247) target = $region36
      $region35: #{film_forward.1} parent=5 // pred_region
        %s251 = ssub.s32 %s20, 1
        %s252 = sand.u32 %s47, 1
        %s253 = scalar_lea.sflag [#allocation3], %s252
        %s254 = sand.u32 %s47, 1
        %s255 = smul.addr %s254, 64
        %s256 = scalar_lea.vmem [#allocation2], %s255
        // Predicated region
        $region37: #{film_forward.1} parent=35 // pred_check
          %p257 = pneg %p60
        $region38: #{film_forward.1} parent=35 // pred_check_branch
          %259 = sbr.rel (%p257) target = $region40
        $region39: #{film_forward.1} parent=35 // pred_region
          %260 = dma.done %s253, 1024
        $region40: #{film_forward.1} parent=35 // pred_fallthru
          _
        %s261 = sand.u32 %s25, 1
        %s262 = scalar_lea.sflag [#allocation6], %s261
        %s263 = sand.u32 %s75, 1
        %s264 = smul.addr %s263, 64
        %s265 = scalar_lea.vmem [#allocation5], %s264
        // Predicated region
        $region41: #{film_forward.1} parent=35 // pred_check
          %p266 = pneg %p88
        $region42: #{film_forward.1} parent=35 // pred_check_branch
          %268 = sbr.rel (%p266) target = $region44
        $region43: #{film_forward.1} parent=35 // pred_region
          %269 = dma.done %s262, 1024
        $region44: #{film_forward.1} parent=35 // pred_fallthru
          _
        // Predicated region
        $region45: #{film_forward.1} parent=35 // pred_check
          %p270 = pneg %p109
        $region46: #{film_forward.1} parent=35 // pred_check_branch
          %272 = sbr.rel (%p270) target = $region48
        $region47: #{film_forward.1} parent=35 // pred_region
          %273 = dma.done [#allocation6], 256
        $region48: #{film_forward.1} parent=35 // pred_fallthru
          _
        // Predicated region
        $region49: #{film_forward.1} parent=35 // pred_check
          %p274 = pneg %p130
        $region50: #{film_forward.1} parent=35 // pred_check_branch
          %276 = sbr.rel (%p274) target = $region52
        $region51: #{film_forward.1} parent=35 // pred_region
          %277 = dma.done [#allocation9], 256
        $region52: #{film_forward.1} parent=35 // pred_fallthru
          _
        %s278 = sand.u32 %s47, 1
        %s279 = scalar_lea.sflag [#allocation3], %s278
        %s280 = sand.u32 %s47, 1
        %s281 = smul.addr %s280, 64
        %s282 = scalar_lea.vmem [#allocation2], %s281
        %p283 = pneg %p60
        %p284 = pneg %p57
        %s285 = sand.u32 %s25, 1
        %s286 = scalar_lea.sflag [#allocation6], %s285
        %s287 = sand.u32 %s75, 1
        %s288 = smul.addr %s287, 64
        %s289 = scalar_lea.vmem [#allocation5], %s288
        %p290 = pneg %p88
        %p291 = pneg %p85
        %p292 = pneg %p109
        %p293 = pneg %p106
        %p294 = pneg %p130
        %p295 = pneg %p127
        %p296 = pneg %p158
        %p297 = pneg %p155
        %s298 = sand.u32 %s145, 1
        %s299 = scalar_lea.sflag [#allocation4], %s298
        %s300 = sand.u32 %s145, 1
        %s301 = smul.addr %s300, 64
        %s302 = scalar_lea.vmem [#allocation10], %s301
        %s303 = smul.u32 8, %s30
        %s304 = smul.u32 8, %s30
        %s305 = smul.u32 8, %s30
        %v306 = vld [vmem:[#allocation7] sm:$0xff]
        %v307 = vld [vmem:[#allocation7 + $0x8] sm:$0xff]
        %v308 = vld [vmem:[%s265] sm:$0xff]
        %v309 = vld [vmem:[%s265 + $0x8] sm:$0xff]
        %v310 = vld [vmem:[%s265 + $0x10] sm:$0xff]
        %v311 = vld [vmem:[%s265 + $0x18] sm:$0xff]
        %v312 = vld [vmem:[%s265 + $0x20] sm:$0xff]
        %v313 = vld [vmem:[%s265 + $0x28] sm:$0xff]
        %v314 = vld [vmem:[%s265 + $0x30] sm:$0xff]
        %v315 = vld [vmem:[%s265 + $0x38] sm:$0xff]
        %v316 = vld [vmem:[#allocation8] sm:$0xff]
        %v317 = vld [vmem:[#allocation8 + $0x8] sm:$0xff]
        %319 = vset.pattern.permute.xlu0 0
        %320 = vperm.xlu0 %319, %v316
        %v321 = vpop.permute.xlu0 %320
        %324 = vset.pattern.permute.xlu0 0
        %325 = vperm.xlu0 %324, %v317
        %v326 = vpop.permute.xlu0 %325
        %vm328 = vcmask 64512
        %v330 = vsel %vm328, %v306, 0
        %v333 = vsel %vm328, %v307, 0
        %335 = vmatprep.subr.mxu0 %v309
        %336 = vmatpush1.msra.mxu0 %v308
        %337 = vmatprep.subr.mxu0 0.0
        %338 = vmatpush1.msra.mxu0 0.0
        %339 = vmatprep.subr.mxu0 0.0
        %340 = vmatpush1.msra.mxu0 0.0
        %341 = vmatprep.subr.mxu0 0.0
        %342 = vmatpush1.msra.mxu0 0.0
        %343 = vmatprep.subr.mxu0 0.0
        %344 = vmatpush1.msra.mxu0 0.0
        %345 = vmatprep.subr.mxu0 0.0
        %346 = vmatpush1.msra.mxu0 0.0
        %347 = vmatprep.subr.mxu0 0.0
        %348 = vmatpush1.msra.mxu0 0.0
        %349 = vmatprep.subr.mxu0 0.0
        %350 = vmatpush1.msra.mxu0 0.0
        %351 = vmatprep.subr.mxu0 0.0
        %352 = vmatpush1.msra.mxu0 0.0
        %353 = vmatprep.subr.mxu0 0.0
        %354 = vmatpush1.msra.mxu0 0.0
        %355 = vmatprep.subr.mxu0 0.0
        %356 = vmatpush1.msra.mxu0 0.0
        %357 = vmatprep.subr.mxu0 0.0
        %358 = vmatpush1.msra.mxu0 0.0
        %359 = vmatprep.subr.mxu0 0.0
        %360 = vmatpush1.msra.mxu0 0.0
        %361 = vmatprep.subr.mxu0 0.0
        %362 = vmatpush1.msra.mxu0 0.0
        %363 = vmatprep.subr.mxu0 0.0
        %364 = vmatpush1.msra.mxu0 0.0
        %365 = vmatprep.subr.mxu0 0.0
        %366 = vmatpush1.msra.mxu0 0.0
        %367 = vmatprep.subr.mxu0 0.0
        %368 = vmatpush1.msra.mxu0 0.0
        %369 = vmatprep.subr.mxu0 0.0
        %370 = vmatpush1.msra.mxu0 0.0
        %371 = vmatprep.subr.mxu0 0.0
        %372 = vmatpush1.msra.mxu0 0.0
        %373 = vmatprep.subr.mxu0 0.0
        %374 = vmatpush1.msra.mxu0 0.0
        %375 = vmatprep.subr.mxu0 0.0
        %376 = vmatpush1.msra.mxu0 0.0
        %377 = vmatprep.subr.mxu0 0.0
        %378 = vmatpush1.msra.mxu0 0.0
        %379 = vmatprep.subr.mxu0 0.0
        %380 = vmatpush1.msra.mxu0 0.0
        %381 = vmatprep.subr.mxu0 0.0
        %382 = vmatpush1.msra.mxu0 0.0
        %383 = vmatprep.subr.mxu0 0.0
        %384 = vmatpush1.msra.mxu0 0.0
        %385 = vmatprep.subr.mxu0 0.0
        %386 = vmatpush1.msra.mxu0 0.0
        %387 = vmatprep.subr.mxu0 0.0
        %388 = vmatpush1.msra.mxu0 0.0
        %389 = vmatprep.subr.mxu0 0.0
        %390 = vmatpush1.msra.mxu0 0.0
        %391 = vmatprep.subr.mxu0 0.0
        %392 = vmatpush1.msra.mxu0 0.0
        %393 = vmatprep.subr.mxu0 0.0
        %394 = vmatpush1.msra.mxu0 0.0
        %395 = vmatprep.subr.mxu0 0.0
        %396 = vmatpush1.msra.mxu0 0.0
        %397 = vmatprep.subr.mxu0 0.0
        %398 = vmatpush1.msra.mxu0 0.0
        %399 = vmatprep.mubr.f32.mxu0 0.0
        %400 = vmatmul.mubr.f32.gmra.mrb[0].mxu0 %v330
        %v401 = vpop.f32.mrb[0].mxu0
        %v402 = vadd.f32 %v321, %v401
        %v403 = vpop.f32.mrb[0].mxu0
        %v404 = vadd.f32 %v321, %v403
        %405 = vmatprep.mubr.f32.mxu0 0.0
        %406 = vmatmul.mubr.f32.gmra.mrb[0].mxu0 %v333
        %v407 = vpop.f32.mrb[0].mxu0
        %v408 = vadd.f32 %v326, %v407
        %v409 = vpop.f32.mrb[0].mxu0
        %v410 = vadd.f32 %v326, %v409
        %411 = vdwg.mxu0
        %412 = vmatprep.subr.mxu0 %v311
        %413 = vmatpush1.msra.mxu0 %v310
        %414 = vmatprep.subr.mxu0 0.0
        %415 = vmatpush1.msra.mxu0 0.0
        %416 = vmatprep.subr.mxu0 0.0
        %417 = vmatpush1.msra.mxu0 0.0
        %418 = vmatprep.subr.mxu0 0.0
        %419 = vmatpush1.msra.mxu0 0.0
        %420 = vmatprep.subr.mxu0 0.0
        %421 = vmatpush1.msra.mxu0 0.0
        %422 = vmatprep.subr.mxu0 0.0
        %423 = vmatpush1.msra.mxu0 0.0
        %424 = vmatprep.subr.mxu0 0.0
        %425 = vmatpush1.msra.mxu0 0.0
        %426 = vmatprep.subr.mxu0 0.0
        %427 = vmatpush1.msra.mxu0 0.0
        %428 = vmatprep.subr.mxu0 0.0
        %429 = vmatpush1.msra.mxu0 0.0
        %430 = vmatprep.subr.mxu0 0.0
        %431 = vmatpush1.msra.mxu0 0.0
        %432 = vmatprep.subr.mxu0 0.0
        %433 = vmatpush1.msra.mxu0 0.0
        %434 = vmatprep.subr.mxu0 0.0
        %435 = vmatpush1.msra.mxu0 0.0
        %436 = vmatprep.subr.mxu0 0.0
        %437 = vmatpush1.msra.mxu0 0.0
        %438 = vmatprep.subr.mxu0 0.0
        %439 = vmatpush1.msra.mxu0 0.0
        %440 = vmatprep.subr.mxu0 0.0
        %441 = vmatpush1.msra.mxu0 0.0
        %442 = vmatprep.subr.mxu0 0.0
        %443 = vmatpush1.msra.mxu0 0.0
        %444 = vmatprep.subr.mxu0 0.0
        %445 = vmatpush1.msra.mxu0 0.0
        %446 = vmatprep.subr.mxu0 0.0
        %447 = vmatpush1.msra.mxu0 0.0
        %448 = vmatprep.subr.mxu0 0.0
        %449 = vmatpush1.msra.mxu0 0.0
        %450 = vmatprep.subr.mxu0 0.0
        %451 = vmatpush1.msra.mxu0 0.0
        %452 = vmatprep.subr.mxu0 0.0
        %453 = vmatpush1.msra.mxu0 0.0
        %454 = vmatprep.subr.mxu0 0.0
        %455 = vmatpush1.msra.mxu0 0.0
        %456 = vmatprep.subr.mxu0 0.0
        %457 = vmatpush1.msra.mxu0 0.0
        %458 = vmatprep.subr.mxu0 0.0
        %459 = vmatpush1.msra.mxu0 0.0
        %460 = vmatprep.subr.mxu0 0.0
        %461 = vmatpush1.msra.mxu0 0.0
        %462 = vmatprep.subr.mxu0 0.0
        %463 = vmatpush1.msra.mxu0 0.0
        %464 = vmatprep.subr.mxu0 0.0
        %465 = vmatpush1.msra.mxu0 0.0
        %466 = vmatprep.subr.mxu0 0.0
        %467 = vmatpush1.msra.mxu0 0.0
        %468 = vmatprep.subr.mxu0 0.0
        %469 = vmatpush1.msra.mxu0 0.0
        %470 = vmatprep.subr.mxu0 0.0
        %471 = vmatpush1.msra.mxu0 0.0
        %472 = vmatprep.subr.mxu0 0.0
        %473 = vmatpush1.msra.mxu0 0.0
        %474 = vmatprep.subr.mxu0 0.0
        %475 = vmatpush1.msra.mxu0 0.0
        %476 = vmatprep.mubr.f32.mxu0 0.0
        %477 = vmatmul.mubr.f32.gmra.mrb[0].mxu0 %v330
        %v478 = vpop.f32.mrb[0].mxu0
        %v479 = vadd.f32 %v321, %v478
        %v480 = vpop.f32.mrb[0].mxu0
        %v481 = vadd.f32 %v321, %v480
        %482 = vmatprep.mubr.f32.mxu0 0.0
        %483 = vmatmul.mubr.f32.gmra.mrb[0].mxu0 %v333
        %v484 = vpop.f32.mrb[0].mxu0
        %v485 = vadd.f32 %v326, %v484
        %v486 = vpop.f32.mrb[0].mxu0
        %v487 = vadd.f32 %v326, %v486
        %488 = vdwg.mxu0
        %489 = vmatprep.subr.mxu0 %v313
        %490 = vmatpush1.msra.mxu0 %v312
        %491 = vmatprep.subr.mxu0 0.0
        %492 = vmatpush1.msra.mxu0 0.0
        %493 = vmatprep.subr.mxu0 0.0
        %494 = vmatpush1.msra.mxu0 0.0
        %495 = vmatprep.subr.mxu0 0.0
        %496 = vmatpush1.msra.mxu0 0.0
        %497 = vmatprep.subr.mxu0 0.0
        %498 = vmatpush1.msra.mxu0 0.0
        %499 = vmatprep.subr.mxu0 0.0
        %500 = vmatpush1.msra.mxu0 0.0
        %501 = vmatprep.subr.mxu0 0.0
        %502 = vmatpush1.msra.mxu0 0.0
        %503 = vmatprep.subr.mxu0 0.0
        %504 = vmatpush1.msra.mxu0 0.0
        %505 = vmatprep.subr.mxu0 0.0
        %506 = vmatpush1.msra.mxu0 0.0
        %507 = vmatprep.subr.mxu0 0.0
        %508 = vmatpush1.msra.mxu0 0.0
        %509 = vmatprep.subr.mxu0 0.0
        %510 = vmatpush1.msra.mxu0 0.0
        %511 = vmatprep.subr.mxu0 0.0
        %512 = vmatpush1.msra.mxu0 0.0
        %513 = vmatprep.subr.mxu0 0.0
        %514 = vmatpush1.msra.mxu0 0.0
        %515 = vmatprep.subr.mxu0 0.0
        %516 = vmatpush1.msra.mxu0 0.0
        %517 = vmatprep.subr.mxu0 0.0
        %518 = vmatpush1.msra.mxu0 0.0
        %519 = vmatprep.subr.mxu0 0.0
        %520 = vmatpush1.msra.mxu0 0.0
        %521 = vmatprep.subr.mxu0 0.0
        %522 = vmatpush1.msra.mxu0 0.0
        %523 = vmatprep.subr.mxu0 0.0
        %524 = vmatpush1.msra.mxu0 0.0
        %525 = vmatprep.subr.mxu0 0.0
        %526 = vmatpush1.msra.mxu0 0.0
        %527 = vmatprep.subr.mxu0 0.0
        %528 = vmatpush1.msra.mxu0 0.0
        %529 = vmatprep.subr.mxu0 0.0
        %530 = vmatpush1.msra.mxu0 0.0
        %531 = vmatprep.subr.mxu0 0.0
        %532 = vmatpush1.msra.mxu0 0.0
        %533 = vmatprep.subr.mxu0 0.0
        %534 = vmatpush1.msra.mxu0 0.0
        %535 = vmatprep.subr.mxu0 0.0
        %536 = vmatpush1.msra.mxu0 0.0
        %537 = vmatprep.subr.mxu0 0.0
        %538 = vmatpush1.msra.mxu0 0.0
        %539 = vmatprep.subr.mxu0 0.0
        %540 = vmatpush1.msra.mxu0 0.0
        %541 = vmatprep.subr.mxu0 0.0
        %542 = vmatpush1.msra.mxu0 0.0
        %543 = vmatprep.subr.mxu0 0.0
        %544 = vmatpush1.msra.mxu0 0.0
        %545 = vmatprep.subr.mxu0 0.0
        %546 = vmatpush1.msra.mxu0 0.0
        %547 = vmatprep.subr.mxu0 0.0
        %548 = vmatpush1.msra.mxu0 0.0
        %549 = vmatprep.subr.mxu0 0.0
        %550 = vmatpush1.msra.mxu0 0.0
        %551 = vmatprep.subr.mxu0 0.0
        %552 = vmatpush1.msra.mxu0 0.0
        %553 = vmatprep.mubr.f32.mxu0 0.0
        %554 = vmatmul.mubr.f32.gmra.mrb[0].mxu0 %v330
        %v555 = vpop.f32.mrb[0].mxu0
        %v556 = vadd.f32 %v321, %v555
        %v557 = vpop.f32.mrb[0].mxu0
        %v558 = vadd.f32 %v321, %v557
        %559 = vmatprep.mubr.f32.mxu0 0.0
        %560 = vmatmul.mubr.f32.gmra.mrb[0].mxu0 %v333
        %v561 = vpop.f32.mrb[0].mxu0
        %v562 = vadd.f32 %v326, %v561
        %v563 = vpop.f32.mrb[0].mxu0
        %v564 = vadd.f32 %v326, %v563
        %565 = vdwg.mxu0
        %566 = vmatprep.subr.mxu0 %v315
        %567 = vmatpush1.msra.mxu0 %v314
        %568 = vmatprep.subr.mxu0 0.0
        %569 = vmatpush1.msra.mxu0 0.0
        %570 = vmatprep.subr.mxu0 0.0
        %571 = vmatpush1.msra.mxu0 0.0
        %572 = vmatprep.subr.mxu0 0.0
        %573 = vmatpush1.msra.mxu0 0.0
        %574 = vmatprep.subr.mxu0 0.0
        %575 = vmatpush1.msra.mxu0 0.0
        %576 = vmatprep.subr.mxu0 0.0
        %577 = vmatpush1.msra.mxu0 0.0
        %578 = vmatprep.subr.mxu0 0.0
        %579 = vmatpush1.msra.mxu0 0.0
        %580 = vmatprep.subr.mxu0 0.0
        %581 = vmatpush1.msra.mxu0 0.0
        %582 = vmatprep.subr.mxu0 0.0
        %583 = vmatpush1.msra.mxu0 0.0
        %584 = vmatprep.subr.mxu0 0.0
        %585 = vmatpush1.msra.mxu0 0.0
        %586 = vmatprep.subr.mxu0 0.0
        %587 = vmatpush1.msra.mxu0 0.0
        %588 = vmatprep.subr.mxu0 0.0
        %589 = vmatpush1.msra.mxu0 0.0
        %590 = vmatprep.subr.mxu0 0.0
        %591 = vmatpush1.msra.mxu0 0.0
        %592 = vmatprep.subr.mxu0 0.0
        %593 = vmatpush1.msra.mxu0 0.0
        %594 = vmatprep.subr.mxu0 0.0
        %595 = vmatpush1.msra.mxu0 0.0
        %596 = vmatprep.subr.mxu0 0.0
        %597 = vmatpush1.msra.mxu0 0.0
        %598 = vmatprep.subr.mxu0 0.0
        %599 = vmatpush1.msra.mxu0 0.0
        %600 = vmatprep.subr.mxu0 0.0
        %601 = vmatpush1.msra.mxu0 0.0
        %602 = vmatprep.subr.mxu0 0.0
        %603 = vmatpush1.msra.mxu0 0.0
        %604 = vmatprep.subr.mxu0 0.0
        %605 = vmatpush1.msra.mxu0 0.0
        %606 = vmatprep.subr.mxu0 0.0
        %607 = vmatpush1.msra.mxu0 0.0
        %608 = vmatprep.subr.mxu0 0.0
        %609 = vmatpush1.msra.mxu0 0.0
        %610 = vmatprep.subr.mxu0 0.0
        %611 = vmatpush1.msra.mxu0 0.0
        %612 = vmatprep.subr.mxu0 0.0
        %613 = vmatpush1.msra.mxu0 0.0
        %614 = vmatprep.subr.mxu0 0.0
        %615 = vmatpush1.msra.mxu0 0.0
        %616 = vmatprep.subr.mxu0 0.0
        %617 = vmatpush1.msra.mxu0 0.0
        %618 = vmatprep.subr.mxu0 0.0
        %619 = vmatpush1.msra.mxu0 0.0
        %620 = vmatprep.subr.mxu0 0.0
        %621 = vmatpush1.msra.mxu0 0.0
        %622 = vmatprep.subr.mxu0 0.0
        %623 = vmatpush1.msra.mxu0 0.0
        %624 = vmatprep.subr.mxu0 0.0
        %625 = vmatpush1.msra.mxu0 0.0
        %626 = vmatprep.subr.mxu0 0.0
        %627 = vmatpush1.msra.mxu0 0.0
        %628 = vmatprep.subr.mxu0 0.0
        %629 = vmatpush1.msra.mxu0 0.0
        %630 = vmatprep.mubr.f32.mxu0 0.0
        %631 = vmatmul.mubr.f32.gmra.mrb[0].mxu0 %v330
        %v632 = vpop.f32.mrb[0].mxu0
        %v633 = vadd.f32 %v321, %v632
        %v634 = vpop.f32.mrb[0].mxu0
        %v635 = vadd.f32 %v321, %v634
        %636 = vmatprep.mubr.f32.mxu0 0.0
        %637 = vmatmul.mubr.f32.gmra.mrb[0].mxu0 %v333
        %v638 = vpop.f32.mrb[0].mxu0
        %v639 = vadd.f32 %v326, %v638
        %v640 = vpop.f32.mrb[0].mxu0
        %v641 = vadd.f32 %v326, %v640
        %642 = vdwg.mxu0
        %v643 = vld [vmem:[%s256] sm:$0xff]
        %v644 = vld [vmem:[%s256 + $0x8] sm:$0xff]
        %v645 = vld [vmem:[%s256 + $0x10] sm:$0xff]
        %v646 = vld [vmem:[%s256 + $0x18] sm:$0xff]
        %v647 = vld [vmem:[%s256 + $0x20] sm:$0xff]
        %v648 = vld [vmem:[%s256 + $0x28] sm:$0xff]
        %v649 = vld [vmem:[%s256 + $0x30] sm:$0xff]
        %v650 = vld [vmem:[%s256 + $0x38] sm:$0xff]
        %v651 = vmul.f32 %v402, %v643
        %v652 = vmul.f32 %v404, %v644
        %v653 = vmul.f32 %v479, %v645
        %v654 = vmul.f32 %v481, %v646
        %v655 = vmul.f32 %v556, %v647
        %v656 = vmul.f32 %v558, %v648
        %v657 = vmul.f32 %v633, %v649
        %v658 = vmul.f32 %v635, %v650
        %v659 = vadd.f32 %v651, %v408
        %v660 = vadd.f32 %v652, %v410
        %v661 = vadd.f32 %v653, %v485
        %v662 = vadd.f32 %v654, %v487
        %v663 = vadd.f32 %v655, %v562
        %v664 = vadd.f32 %v656, %v564
        %v665 = vadd.f32 %v657, %v639
        %v666 = vadd.f32 %v658, %v641
        %667 = vst [vmem:[%s302] sm:$0xff] %v659
        %668 = vst [vmem:[%s302 + $0x8] sm:$0xff] %v660
        %669 = vst [vmem:[%s302 + $0x10] sm:$0xff] %v661
        %670 = vst [vmem:[%s302 + $0x18] sm:$0xff] %v662
        %671 = vst [vmem:[%s302 + $0x20] sm:$0xff] %v663
        %672 = vst [vmem:[%s302 + $0x28] sm:$0xff] %v664
        %673 = vst [vmem:[%s302 + $0x30] sm:$0xff] %v665
        %674 = vst [vmem:[%s302 + $0x38] sm:$0xff] %v666
        %s675 = sand.u32 %s145, 1
        %s676 = scalar_lea.sflag [#allocation4], %s675
        %s677 = sand.u32 %s145, 1
        %s678 = smul.addr %s677, 64
        %s679 = scalar_lea.vmem [#allocation10], %s678
        // Predicated region
        $region53: #{film_forward.1} parent=35 // pred_check
          %p680 = pneg %p155
        $region54: #{film_forward.1} parent=35 // pred_check_branch
          %682 = sbr.rel (%p680) target = $region56
        $region55: #{film_forward.1} parent=35 // pred_region
          %s683 = smul.u32 8, %s30
          %s685 = ssub.s32 1024, 1024
          %686 = vsyncadd %s676, %s685
          %s687 = smul.addr %s29, 8
          %s688 = sadd.s32 %s683, %s687
          %s689 = smul.addr %s688, 128
          %s690 = scalar_lea.hbm %s4, %s689
          %s692 = sshll.u32 %s679, 4
          %s693 = int_to_ptr.vmem [resolvable:$true] %s692
          %695 = dma.vmem_to_hbm [thread:$0]  %s693, 1024, %s690, %s676
        $region56: #{film_forward.1} parent=35 // pred_fallthru
          _
      $region36: #{film_forward.1} parent=5 // pred_fallthru
        _
      %p696 = scmp.le.s32.totalorder 2, %s20
      // Predicated region
      $region57: #{film_forward.1} parent=5 // pred_check
        %p697 = pneg %p696
      $region58: #{film_forward.1} parent=5 // pred_check_branch
        %699 = sbr.rel (%p697) target = $region60
      $region59: #{film_forward.1} parent=5 // pred_region
        %s700 = ssub.s32 %s20, 2
        // Predicated region
        $region61: #{film_forward.1} parent=59 // pred_check
          %p701 = pneg %p161
        $region62: #{film_forward.1} parent=59 // pred_check_branch
          %703 = sbr.rel (%p701) target = $region64
        $region63: #{film_forward.1} parent=59 // pred_region
          %s704 = sand.u32 %s146, 1
          %s705 = scalar_lea.sflag [#allocation4], %s704
          %s706 = sand.u32 %s146, 1
          %s707 = smul.addr %s706, 64
          %s708 = scalar_lea.vmem [#allocation10], %s707
          %709 = dma.done %s705, 1024
        $region64: #{film_forward.1} parent=59 // pred_fallthru
          _
      $region60: #{film_forward.1} parent=5 // pred_fallthru
        _
    $region6: #{film_forward.1} parent=1 // loop_footer
      %s24 = sadd.s32 1, %s20
    $region7: #{film_forward.1} parent=1 // loop_footer_branch
      %19 = sbr.rel target = $region3
    $region8: #{film_forward.1} parent=1 // loop_exit
      _
    %710 = vsyncpa [#allocation3], 1
    %s711 = scalar_lea.sflag [#allocation3], 1
    %712 = vsyncpa %s711, 1
    %713 = vsyncpa [#allocation6], 1
    %s714 = scalar_lea.sflag [#allocation6], 1
    %715 = vsyncpa %s714, 1
    %716 = vsyncpa [#allocation9], 1
    %717 = vsyncpa [#allocation4], 1
    %s718 = scalar_lea.sflag [#allocation4], 1
    %719 = vsyncpa %s718, 1

</llo_original>
